<compile_context>
chip_gen: v6e
topology: v6e:2x2x1
jax: 0.10.0
libtpu: 0.0.40
codegen_flags: <defaults>
</compile_context>

<pallas_src>
import jax
import jax.numpy as jnp
from jax.experimental import pallas as pl
from jax.experimental.pallas import tpu as pltpu

_LANE = 128


def _round_up(v, m):
    return ((v + m - 1) // m) * m


def _apply_A(a, x):
    """out = A @ x.  a: (n, n) f32, x: (n, bt) f32."""
    n = a.shape[1]
    if n <= 16:
        # Tiny contraction: exact f32 on the VPU (n broadcast mul-adds), skip MXU.
        acc = a[:, 0:1] * x[0:1, :]
        for k in range(1, n):
            acc = acc + a[:, k:k + 1] * x[k:k + 1, :]
        return acc
    # Larger systems: single MXU matmul; HIGH (not HIGHEST) per perf review.
    return jnp.dot(a, x, preferred_element_type=jnp.float32,
                   precision=jax.lax.Precision.HIGH)


def _kernel_with_c(a_ref, c_ref, x_ref, out_ref):
    out_ref[...] = (_apply_A(a_ref[...], x_ref[...]) - c_ref[...]).astype(out_ref.dtype)


def _kernel_no_c(a_ref, x_ref, out_ref):
    out_ref[...] = _apply_A(a_ref[...], x_ref[...]).astype(out_ref.dtype)


def build_system_env(n_agents=1, xbar=None, m=1.0, k=1.0, b=0.2):
    """Mirror SystemEnv.__init__: build the constant operators once."""
    ni = 4
    n = ni * n_agents
    j_agent = jnp.array([[0.0, 0.0, -1.0, 0.0],
                         [0.0, 0.0, 0.0, -1.0],
                         [1.0, 0.0, 0.0, 0.0],
                         [0.0, 1.0, 0.0, 0.0]], jnp.float32)
    r_agent = jnp.diag(jnp.array([b, b, 0.0, 0.0], jnp.float32))
    q_agent = jnp.diag(jnp.array([1.0 / m, 1.0 / m, k, k], jnp.float32))
    J = jax.scipy.linalg.block_diag(*([j_agent] * n_agents))
    R = jax.scipy.linalg.block_diag(*([r_agent] * n_agents))
    Q = jax.scipy.linalg.block_diag(*([q_agent] * n_agents))
    # forward(t, x) = (J - R) @ gradH,  gradH = Q @ (x - xbar),  Q symmetric.
    A = ((J - R) @ Q).astype(jnp.float32)            # fused constant operator (n, n)
    if xbar is None:
        xbar_arr = jnp.zeros((n, 1), jnp.float32)
        c = None                                     # c = A @ 0 = 0 -> c-free kernel
    else:
        xbar_arr = jnp.asarray(xbar, jnp.float32).reshape(n, 1)
        c = (A @ xbar_arr).astype(jnp.float32)       # fused constant offset (n, 1)
    return A, c, (J, R, Q, xbar_arr)


def system_env_forward(t, x, A, c=None, *, batch_tile=16384,
                       vmem_budget_bytes=8 << 20):
    """Pallas implementation of SystemEnv.forward(t, x); x is (n, B) -> (n, B)."""
    del t  # the system is time-invariant
    n, B = x.shape
    x = x.astype(jnp.float32)

    # --- tile selection (no divisor search, no VMEM-resident fallback) ---------
    B_pad = _round_up(B, _LANE)
    bt = min(_round_up(max(int(batch_tile), _LANE), _LANE), B_pad)
    # Keep >= 2 grid steps when the batch allows it so v7x shards both TCs.
    if B_pad >= 2 * _LANE:
        bt = min(bt, _round_up(pl.cdiv(B_pad, 2), _LANE))
    # VMEM budget: double-buffered x + out blocks (2 arrays * 2 buffers * n*bt*4B)
    # must stay under the scoped-VMEM default on every generation.
    bt_cap = max(_LANE, (vmem_budget_bytes // (16 * n)) // _LANE * _LANE)
    bt = max(_LANE, min(bt, bt_cap))

    grid = (pl.cdiv(B, bt),)  # Pallas masks the ragged boundary block.

    a_spec = pl.BlockSpec((n, n), lambda i: (0, 0))      # VMEM-resident constant
    x_spec = pl.BlockSpec((n, bt), lambda i: (0, i))     # advances over the batch
    o_spec = pl.BlockSpec((n, bt), lambda i: (0, i))     # lane-dense output store

    if c is None:
        kernel = _kernel_no_c
        in_specs = [a_spec, x_spec]
        operands = (A, x)
    else:
        c_spec = pl.BlockSpec((n, 1), lambda i: (0, 0))  # VMEM-resident constant
        kernel = _kernel_with_c
        in_specs = [a_spec, c_spec, x_spec]
        operands = (A, c, x)

    return pl.pallas_call(
        kernel,
        out_shape=jax.ShapeDtypeStruct((n, B), jnp.float32),
        grid=grid,
        in_specs=in_specs,
        out_specs=o_spec,
        compiler_params=pltpu.CompilerParams(
            dimension_semantics=("parallel",)),          # shard batch across TCs
    )(*operands)


def _reference(x, J, R, Q, xbar):
    """Pure-JAX mirror of the PyTorch forward (analytic gradH)."""
    hp = jax.lax.Precision.HIGHEST
    gradH = jnp.matmul(Q, x - xbar, precision=hp)        # Q @ (x - xbar)
    f = jnp.matmul(gradH.T, (J - R).T, precision=hp)     # F.linear(gradH.T, J - R)
    return f.T                                           # forward returns f.T


if __name__ == "__main__":
    n_agents = 2                  # n = 4 * n_agents = 8 states (sublane-aligned)
    n = 4 * n_agents
    t = jnp.float32(0.0)

    key = jax.random.PRNGKey(0)
    kx, kb, kr = jax.random.split(key, 3)

    # Case 1: nonzero xbar (c path); lane-aligned batch -> 2 parallel tiles.
    batch = 512
    xbar = 0.1 * jax.random.normal(kb, (n, 1), jnp.float32)
    x = jax.random.normal(kx, (n, batch), jnp.float32)
    A, c, (J, R, Q, xbar_arr) = build_system_env(n_agents=n_agents, xbar=xbar)
    out = jax.block_until_ready(system_env_forward(t, x, A, c))
    ref = _reference(x, J, R, Q, xbar_arr)
    assert out.shape == (n, batch), out.shape
    assert jnp.allclose(out, ref, rtol=1e-4, atol=1e-4), "mismatch (c path)"

    # Case 2: default zero xbar (c-free kernel); ragged batch exercises the
    # cdiv-grid boundary masking that replaced the full-VMEM fallback.
    batch2 = 200
    x2 = jax.random.normal(kr, (n, batch2), jnp.float32)
    A2, c2, (J2, R2, Q2, xbar2) = build_system_env(n_agents=n_agents)
    assert c2 is None
    out2 = jax.block_until_ready(system_env_forward(t, x2, A2, c2))
    ref2 = _reference(x2, J2, R2, Q2, xbar2)
    assert out2.shape == (n, batch2), out2.shape
    assert jnp.allclose(out2, ref2, rtol=1e-4, atol=1e-4), "mismatch (ragged path)"

    print("KERNEL_OK")
</pallas_src>

<mosaic_0001>
module attributes {stable_mosaic.version = 11 : i64} {
  func.func @_kernel_with_c(%arg0: i32, %arg1: memref<8x8xf32, #tpu.memory_space<vmem>>, %arg2: memref<8x1xf32, #tpu.memory_space<vmem>>, %arg3: memref<8x256xf32, #tpu.memory_space<vmem>>, %arg4: memref<8x256xf32, #tpu.memory_space<vmem>>) attributes {dimension_semantics = [#tpu.dimension_semantics<parallel>], iteration_bounds = array<i64: 2>, scalar_prefetch = 0 : i64, scratch_operands = 0 : i64, tpu.core_type = #tpu.core_type<tc>, window_params = [{pipeline_mode = #tpu.pipeline_mode<synchronous>, transform_indices = @transform_0, window_bounds = array<i64: 8, 8>}, {pipeline_mode = #tpu.pipeline_mode<synchronous>, transform_indices = @transform_1, window_bounds = array<i64: 8, 1>}, {transform_indices = @transform_2, window_bounds = array<i64: 8, 256>}, {transform_indices = @transform_3, window_bounds = array<i64: 8, 256>}]} {
    %c0 = arith.constant 0 : index
    %c0_0 = arith.constant 0 : index
    %0 = vector.load %arg1[%c0, %c0_0] : memref<8x8xf32, #tpu.memory_space<vmem>>, vector<8x8xf32>
    %c0_1 = arith.constant 0 : index
    %c0_2 = arith.constant 0 : index
    %1 = vector.load %arg3[%c0_1, %c0_2] : memref<8x256xf32, #tpu.memory_space<vmem>>, vector<8x256xf32>
    %2 = vector.extract_strided_slice %0 {offsets = [0, 0], sizes = [8, 1], strides = [1, 1]} : vector<8x8xf32> to vector<8x1xf32>
    %3 = vector.extract_strided_slice %1 {offsets = [0, 0], sizes = [1, 256], strides = [1, 1]} : vector<8x256xf32> to vector<1x256xf32>
    %4 = vector.broadcast %2 : vector<8x1xf32> to vector<8x256xf32>
    %5 = vector.broadcast %3 : vector<1x256xf32> to vector<8x256xf32>
    %6 = arith.mulf %4, %5 : vector<8x256xf32>
    %7 = vector.extract_strided_slice %0 {offsets = [0, 1], sizes = [8, 1], strides = [1, 1]} : vector<8x8xf32> to vector<8x1xf32>
    %8 = vector.extract_strided_slice %1 {offsets = [1, 0], sizes = [1, 256], strides = [1, 1]} : vector<8x256xf32> to vector<1x256xf32>
    %9 = vector.broadcast %7 : vector<8x1xf32> to vector<8x256xf32>
    %10 = vector.broadcast %8 : vector<1x256xf32> to vector<8x256xf32>
    %11 = arith.mulf %9, %10 : vector<8x256xf32>
    %12 = arith.addf %6, %11 : vector<8x256xf32>
    %13 = vector.extract_strided_slice %0 {offsets = [0, 2], sizes = [8, 1], strides = [1, 1]} : vector<8x8xf32> to vector<8x1xf32>
    %14 = vector.extract_strided_slice %1 {offsets = [2, 0], sizes = [1, 256], strides = [1, 1]} : vector<8x256xf32> to vector<1x256xf32>
    %15 = vector.broadcast %13 : vector<8x1xf32> to vector<8x256xf32>
    %16 = vector.broadcast %14 : vector<1x256xf32> to vector<8x256xf32>
    %17 = arith.mulf %15, %16 : vector<8x256xf32>
    %18 = arith.addf %12, %17 : vector<8x256xf32>
    %19 = vector.extract_strided_slice %0 {offsets = [0, 3], sizes = [8, 1], strides = [1, 1]} : vector<8x8xf32> to vector<8x1xf32>
    %20 = vector.extract_strided_slice %1 {offsets = [3, 0], sizes = [1, 256], strides = [1, 1]} : vector<8x256xf32> to vector<1x256xf32>
    %21 = vector.broadcast %19 : vector<8x1xf32> to vector<8x256xf32>
    %22 = vector.broadcast %20 : vector<1x256xf32> to vector<8x256xf32>
    %23 = arith.mulf %21, %22 : vector<8x256xf32>
    %24 = arith.addf %18, %23 : vector<8x256xf32>
    %25 = vector.extract_strided_slice %0 {offsets = [0, 4], sizes = [8, 1], strides = [1, 1]} : vector<8x8xf32> to vector<8x1xf32>
    %26 = vector.extract_strided_slice %1 {offsets = [4, 0], sizes = [1, 256], strides = [1, 1]} : vector<8x256xf32> to vector<1x256xf32>
    %27 = vector.broadcast %25 : vector<8x1xf32> to vector<8x256xf32>
    %28 = vector.broadcast %26 : vector<1x256xf32> to vector<8x256xf32>
    %29 = arith.mulf %27, %28 : vector<8x256xf32>
    %30 = arith.addf %24, %29 : vector<8x256xf32>
    %31 = vector.extract_strided_slice %0 {offsets = [0, 5], sizes = [8, 1], strides = [1, 1]} : vector<8x8xf32> to vector<8x1xf32>
    %32 = vector.extract_strided_slice %1 {offsets = [5, 0], sizes = [1, 256], strides = [1, 1]} : vector<8x256xf32> to vector<1x256xf32>
    %33 = vector.broadcast %31 : vector<8x1xf32> to vector<8x256xf32>
    %34 = vector.broadcast %32 : vector<1x256xf32> to vector<8x256xf32>
    %35 = arith.mulf %33, %34 : vector<8x256xf32>
    %36 = arith.addf %30, %35 : vector<8x256xf32>
    %37 = vector.extract_strided_slice %0 {offsets = [0, 6], sizes = [8, 1], strides = [1, 1]} : vector<8x8xf32> to vector<8x1xf32>
    %38 = vector.extract_strided_slice %1 {offsets = [6, 0], sizes = [1, 256], strides = [1, 1]} : vector<8x256xf32> to vector<1x256xf32>
    %39 = vector.broadcast %37 : vector<8x1xf32> to vector<8x256xf32>
    %40 = vector.broadcast %38 : vector<1x256xf32> to vector<8x256xf32>
    %41 = arith.mulf %39, %40 : vector<8x256xf32>
    %42 = arith.addf %36, %41 : vector<8x256xf32>
    %43 = vector.extract_strided_slice %0 {offsets = [0, 7], sizes = [8, 1], strides = [1, 1]} : vector<8x8xf32> to vector<8x1xf32>
    %44 = vector.extract_strided_slice %1 {offsets = [7, 0], sizes = [1, 256], strides = [1, 1]} : vector<8x256xf32> to vector<1x256xf32>
    %45 = vector.broadcast %43 : vector<8x1xf32> to vector<8x256xf32>
    %46 = vector.broadcast %44 : vector<1x256xf32> to vector<8x256xf32>
    %47 = arith.mulf %45, %46 : vector<8x256xf32>
    %48 = arith.addf %42, %47 : vector<8x256xf32>
    %c0_3 = arith.constant 0 : index
    %c0_4 = arith.constant 0 : index
    %49 = vector.load %arg2[%c0_3, %c0_4] : memref<8x1xf32, #tpu.memory_space<vmem>>, vector<8x1xf32>
    %50 = vector.broadcast %49 : vector<8x1xf32> to vector<8x256xf32>
    %51 = arith.subf %48, %50 : vector<8x256xf32>
    %c0_5 = arith.constant 0 : index
    %c0_6 = arith.constant 0 : index
    %52 = vector.load %arg4[%c0_5, %c0_6] : memref<8x256xf32, #tpu.memory_space<vmem>>, vector<8x256xf32>
    tpu.vector_store %arg4[%c0_5, %c0_6], %51 {strides = array<i32>} : memref<8x256xf32, #tpu.memory_space<vmem>>, vector<8x256xf32>,
    return
  }
  func.func @transform_0(%arg0: i32) -> (i32, i32) {
    %c0_i32 = arith.constant 0 : i32
    %c0_i32_0 = arith.constant 0 : i32
    %c0_i32_1 = arith.constant 0 : i32
    return %c0_i32, %c0_i32_0 : i32, i32
  }
  func.func @transform_1(%arg0: i32) -> (i32, i32) {
    %c0_i32 = arith.constant 0 : i32
    %c0_i32_0 = arith.constant 0 : i32
    %c0_i32_1 = arith.constant 0 : i32
    return %c0_i32, %c0_i32_0 : i32, i32
  }
  func.func @transform_2(%arg0: i32) -> (i32, i32) {
    %c0_i32 = arith.constant 0 : i32
    %c0_i32_0 = arith.constant 0 : i32
    return %c0_i32, %arg0 : i32, i32
  }
  func.func @transform_3(%arg0: i32) -> (i32, i32) {
    %c0_i32 = arith.constant 0 : i32
    %c0_i32_0 = arith.constant 0 : i32
    return %c0_i32, %arg0 : i32, i32
  }
}

</mosaic_0001>

<llo_original>
// kernel: tpu_custom_call.1
$region0: #{tpu_custom_call.1}
  #allocation0 [shape = 'u32[]', space=smem, size = 0x4, offset = 0x4, fixed_abs, tag = 'smem constant byte address 0x4 - core index']
  #allocation1 [shape = 'u32[144,128]{1,0:T(1,128)}', space=vmem, size = 0x12000, scoped, tag = 'internal scratch']
  %s0 = inlined_call_operand.vmem [shape: f32[8,8], index: 0, kind: input, shape index: {}]
  %s1 = inlined_call_operand.vmem [shape: f32[8,1], index: 1, kind: input, shape index: {}]
  %s2 = inlined_call_operand.hbm [shape: f32[8,512], index: 2, kind: input, shape index: {}]
  %s3 = inlined_call_operand.hbm [shape: f32[8,512], index: 3, kind: output, shape index: {}]
  %s4 = sld [smem:[#allocation0]]
  $region49: #{tpu_custom_call.1} parent=0
    _
  %s6 = ssub.s32 1, %s4
  %s7 = scalar_select 0, %s6, %s4
  $region1: #{tpu_custom_call.1} parent=0
    #allocation2 [shape = 'u8[16384]{0}', space=vmem, size = 0x4000, scoped, tag = 'input window, operand 2']
    #allocation3 [shape = 's32[2]{0}', space=sflag, size = 0x8, scoped, tag = 'scoped memory for tpu_custom_call.1']
    #allocation4 [shape = 's32[2]{0}', space=sflag, size = 0x8, scoped, tag = 'scoped memory for tpu_custom_call.1']
    #allocation5 [shape = 'u8[16384]{0}', space=vmem, size = 0x4000, scoped, tag = 'output window, operand 0']
    %8 = vsyncpa [#allocation3], 0
    %s9 = scalar_lea.sflag [#allocation3], 1
    %10 = vsyncpa %s9, 0
    %11 = vsyncpa [#allocation4], 0
    %s12 = scalar_lea.sflag [#allocation4], 1
    %13 = vsyncpa %s12, 0
    loop: start=0, step=1, limit=4
    $region2: #{tpu_custom_call.1} parent=1 // loop_pre_header
      _
    $region3: #{tpu_custom_call.1} parent=1 // loop_header
      %s15 = sphi 0, %s19
      %p16 = scmp.ge.s32.totalorder %s15, 4
      %s23 = sphi 0, %s23
      %s25 = sphi 0, %s23
      %s26 = sphi 0, %s25
      %s40 = sphi 0, %s26
      %s44 = sphi 0, %s44
      %s46 = sphi 0, %s44
      %s47 = sphi 0, %s46
      %s61 = sphi 0, %s47
      %s67 = sphi 0, %s69
      %s70 = sphi 0, %s67
      %s71 = sphi 0, %s70
      %s87 = sphi 0, %s71
      %s93 = sphi 0, %s95
      %s96 = sphi 0, %s93
      %s97 = sphi 0, %s96
      %s113 = sphi 0, %s97
    $region4: #{tpu_custom_call.1} parent=1 // loop_header_branch
      %18 = sbr.rel (%p16) target = $region8
    $region5: #{tpu_custom_call.1} parent=1 // loop_body
      %s20 = ssub.s32 %s15, 1
      %s21 = ssub.s32 %s15, 2
      %s22 = sadd.s32 %s15, 1
      %s24 = sadd.s32 %s23, 1
      %p27 = scmp.eq.s32.totalorder %s15, 1
      %p28 = scmp.ne.s32.totalorder %s23, %s25
      %p29 = scmp.eq.s32.totalorder %s15, 0
      %p30 = por %p28, %p29
      %p31 = scmp.ne.s32.totalorder %s23, %s25
      %p32 = scmp.eq.s32.totalorder %s20, 1
      %p33 = por %p31, %p32
      %p34 = scmp.ne.s32.totalorder %s25, %s26
      %p35 = scmp.eq.s32.totalorder %s20, 0
      %p36 = por %p34, %p35
      %p37 = scmp.ne.s32.totalorder %s25, %s26
      %p38 = scmp.eq.s32.totalorder %s21, 1
      %p39 = por %p37, %p38
      %p41 = scmp.ne.s32.totalorder %s26, %s40
      %p42 = scmp.eq.s32.totalorder %s21, 0
      %p43 = por %p41, %p42
      %s45 = sadd.s32 %s44, 1
      %p48 = scmp.eq.s32.totalorder %s15, 1
      %p49 = scmp.ne.s32.totalorder %s44, %s46
      %p50 = scmp.eq.s32.totalorder %s15, 0
      %p51 = por %p49, %p50
      %p52 = scmp.ne.s32.totalorder %s44, %s46
      %p53 = scmp.eq.s32.totalorder %s20, 1
      %p54 = por %p52, %p53
      %p55 = scmp.ne.s32.totalorder %s46, %s47
      %p56 = scmp.eq.s32.totalorder %s20, 0
      %p57 = por %p55, %p56
      %p58 = scmp.ne.s32.totalorder %s46, %s47
      %p59 = scmp.eq.s32.totalorder %s21, 1
      %p60 = por %p58, %p59
      %p62 = scmp.ne.s32.totalorder %s47, %s61
      %p63 = scmp.eq.s32.totalorder %s21, 0
      %p64 = por %p62, %p63
      %s65 = ssub.s32 %s15, %s22
      %p66 = scmp.eq.s32.totalorder %s65, 0
      %s68 = sadd.s32 %s67, 1
      %s69 = scalar_select %p66, %s67, %s68
      %p72 = pneg %p66
      %p73 = scmp.eq.s32.totalorder %s15, 1
      %p74 = por %p72, %p73
      %p75 = scmp.ne.s32.totalorder %s67, %s70
      %p76 = scmp.eq.s32.totalorder %s15, 0
      %p77 = por %p75, %p76
      %p78 = scmp.ne.s32.totalorder %s67, %s70
      %p79 = scmp.eq.s32.totalorder %s20, 1
      %p80 = por %p78, %p79
      %p81 = scmp.ne.s32.totalorder %s70, %s71
      %p82 = scmp.eq.s32.totalorder %s20, 0
      %p83 = por %p81, %p82
      %p84 = scmp.ne.s32.totalorder %s70, %s71
      %p85 = scmp.eq.s32.totalorder %s21, 1
      %p86 = por %p84, %p85
      %p88 = scmp.ne.s32.totalorder %s71, %s87
      %p89 = scmp.eq.s32.totalorder %s21, 0
      %p90 = por %p88, %p89
      %s91 = ssub.s32 %s15, %s22
      %p92 = scmp.eq.s32.totalorder %s91, 0
      %s94 = sadd.s32 %s93, 1
      %s95 = scalar_select %p92, %s93, %s94
      %p98 = pneg %p92
      %p99 = scmp.eq.s32.totalorder %s15, 1
      %p100 = por %p98, %p99
      %p101 = scmp.ne.s32.totalorder %s93, %s96
      %p102 = scmp.eq.s32.totalorder %s15, 0
      %p103 = por %p101, %p102
      %p104 = scmp.ne.s32.totalorder %s93, %s96
      %p105 = scmp.eq.s32.totalorder %s20, 1
      %p106 = por %p104, %p105
      %p107 = scmp.ne.s32.totalorder %s96, %s97
      %p108 = scmp.eq.s32.totalorder %s20, 0
      %p109 = por %p107, %p108
      %p110 = scmp.ne.s32.totalorder %s96, %s97
      %p111 = scmp.eq.s32.totalorder %s21, 1
      %p112 = por %p110, %p111
      %p114 = scmp.ne.s32.totalorder %s97, %s113
      %p115 = scmp.eq.s32.totalorder %s21, 0
      %p116 = por %p114, %p115
      %p117 = scmp.le.s32.totalorder 1, %s15
      %p118 = scmp.lt.s32.totalorder %s15, 3
      %p119 = pnand %p117, %p118
      %p120 = pneg %p119
      // Predicated region
      $region9: #{tpu_custom_call.1} parent=5 // pred_check
        _
      $region10: #{tpu_custom_call.1} parent=5 // pred_check_branch
        %122 = sbr.rel (%p119) target = $region12
      $region11: #{tpu_custom_call.1} parent=5 // pred_region
        %s123 = ssub.s32 %s15, 1
        // Predicated region
        $region13: #{tpu_custom_call.1} parent=11 // pred_check
          %p124 = pneg %p36
        $region14: #{tpu_custom_call.1} parent=11 // pred_check_branch
          %126 = sbr.rel (%p124) target = $region16
        $region15: #{tpu_custom_call.1} parent=11 // pred_region
          _
        $region16: #{tpu_custom_call.1} parent=11 // pred_fallthru
          _
        // Predicated region
        $region17: #{tpu_custom_call.1} parent=11 // pred_check
          %p127 = pneg %p57
        $region18: #{tpu_custom_call.1} parent=11 // pred_check_branch
          %129 = sbr.rel (%p127) target = $region20
        $region19: #{tpu_custom_call.1} parent=11 // pred_region
          _
        $region20: #{tpu_custom_call.1} parent=11 // pred_fallthru
          _
      $region12: #{tpu_custom_call.1} parent=5 // pred_fallthru
        _
      %p130 = scmp.lt.s32.totalorder %s15, 2
      // Predicated region
      $region21: #{tpu_custom_call.1} parent=5 // pred_check
        %p131 = pneg %p130
      $region22: #{tpu_custom_call.1} parent=5 // pred_check_branch
        %133 = sbr.rel (%p131) target = $region24
      $region23: #{tpu_custom_call.1} parent=5 // pred_region
        // Predicated region
        $region25: #{tpu_custom_call.1} parent=23 // pred_check
          %p134 = pneg %p77
        $region26: #{tpu_custom_call.1} parent=23 // pred_check_branch
          %136 = sbr.rel (%p134) target = $region28
        $region27: #{tpu_custom_call.1} parent=23 // pred_region
          %s137 = sand.u32 %s67, 1
          %s138 = scalar_lea.sflag [#allocation3], %s137
          %s139 = sand.u32 %s67, 1
          %s140 = smul.addr %s139, 16
          %s141 = scalar_lea.vmem [#allocation2], %s140
          %s142 = smul.u32 2, %s15
          %s144 = ssub.s32 256, 256
          %145 = vsyncadd %s138, %s144
          %s146 = smul.addr %s142, 128
          %s147 = scalar_lea.hbm %s2, %s146
          %s149 = sshll.u32 %s141, 4
          %s150 = int_to_ptr.vmem [resolvable:$true] %s149
          %152 = dma.hbm_to_vmem [thread:$0]  %s147, 256, %s150, %s138
        $region28: #{tpu_custom_call.1} parent=23 // pred_fallthru
          _
      $region24: #{tpu_custom_call.1} parent=5 // pred_fallthru
        _
      %p153 = scmp.le.s32.totalorder 1, %s15
      %p154 = scmp.lt.s32.totalorder %s15, 3
      %p155 = pnand %p153, %p154
      %p156 = pneg %p155
      // Predicated region
      $region29: #{tpu_custom_call.1} parent=5 // pred_check
        _
      $region30: #{tpu_custom_call.1} parent=5 // pred_check_branch
        %158 = sbr.rel (%p155) target = $region32
      $region31: #{tpu_custom_call.1} parent=5 // pred_region
        %s159 = ssub.s32 %s15, 1
        %s160 = sand.u32 %s70, 1
        %s161 = scalar_lea.sflag [#allocation3], %s160
        %s162 = sand.u32 %s70, 1
        %s163 = smul.addr %s162, 16
        %s164 = scalar_lea.vmem [#allocation2], %s163
        // Predicated region
        $region33: #{tpu_custom_call.1} parent=31 // pred_check
          %p165 = pneg %p83
        $region34: #{tpu_custom_call.1} parent=31 // pred_check_branch
          %167 = sbr.rel (%p165) target = $region36
        $region35: #{tpu_custom_call.1} parent=31 // pred_region
          %168 = dma.done %s161, 256
        $region36: #{tpu_custom_call.1} parent=31 // pred_fallthru
          _
        %p169 = pneg %p36
        %p170 = pneg %p33
        %p171 = pneg %p57
        %p172 = pneg %p54
        %s173 = sand.u32 %s70, 1
        %s174 = scalar_lea.sflag [#allocation3], %s173
        %s175 = sand.u32 %s70, 1
        %s176 = smul.addr %s175, 16
        %s177 = scalar_lea.vmem [#allocation2], %s176
        %p178 = pneg %p83
        %p179 = pneg %p80
        %p180 = pneg %p109
        %p181 = pneg %p106
        %s182 = sand.u32 %s96, 1
        %s183 = scalar_lea.sflag [#allocation4], %s182
        %s184 = sand.u32 %s96, 1
        %s185 = smul.addr %s184, 16
        %s186 = scalar_lea.vmem [#allocation5], %s185
        %s187 = smul.u32 2, %s20
        %s188 = smul.u32 2, %s20
        %v189 = vld [vmem:[%s0] sm:$0xff]
        %v190 = vld [vmem:[%s164] sm:$0xff]
        %v191 = vld [vmem:[%s164 + $0x8] sm:$0xff]
        %193 = vset.pattern.permute.xlu0 0
        %194 = vperm.xlu0 %193, %v189
        %v195 = vpop.permute.xlu0 %194
        %v197 = vlaneseq
        %v198 = vshrl.u32 %v197, 7
        %v199 = vsub.s32 0, %v198
        %v200 = vrot.slane %v190, %v199
        %v201 = vlaneseq
        %v202 = vshrl.u32 %v201, 7
        %v203 = vsub.s32 0, %v202
        %v204 = vrot.slane %v191, %v203
        %v205 = vmul.f32 %v195, %v200
        %v206 = vmul.f32 %v195, %v204
        %207 = vset.pattern.permute.xlu0 1
        %208 = vperm.xlu0 %207, %v189
        %v209 = vpop.permute.xlu0 %208
        %v211 = vlaneseq
        %v212 = vshrl.u32 %v211, 7
        %v213 = vsub.s32 1, %v212
        %v214 = vrot.slane %v190, %v213
        %v215 = vlaneseq
        %v216 = vshrl.u32 %v215, 7
        %v217 = vsub.s32 1, %v216
        %v218 = vrot.slane %v191, %v217
        %v219 = vmul.f32 %v209, %v214
        %v220 = vmul.f32 %v209, %v218
        %v221 = vadd.f32 %v205, %v219
        %v222 = vadd.f32 %v206, %v220
        %223 = vset.pattern.permute.xlu0 2
        %224 = vperm.xlu0 %223, %v189
        %v225 = vpop.permute.xlu0 %224
        %v227 = vlaneseq
        %v228 = vshrl.u32 %v227, 7
        %v229 = vsub.s32 2, %v228
        %v230 = vrot.slane %v190, %v229
        %v231 = vlaneseq
        %v232 = vshrl.u32 %v231, 7
        %v233 = vsub.s32 2, %v232
        %v234 = vrot.slane %v191, %v233
        %v235 = vmul.f32 %v225, %v230
        %v236 = vmul.f32 %v225, %v234
        %v237 = vadd.f32 %v221, %v235
        %v238 = vadd.f32 %v222, %v236
        %239 = vset.pattern.permute.xlu0 3
        %240 = vperm.xlu0 %239, %v189
        %v241 = vpop.permute.xlu0 %240
        %v243 = vlaneseq
        %v244 = vshrl.u32 %v243, 7
        %v245 = vsub.s32 3, %v244
        %v246 = vrot.slane %v190, %v245
        %v247 = vlaneseq
        %v248 = vshrl.u32 %v247, 7
        %v249 = vsub.s32 3, %v248
        %v250 = vrot.slane %v191, %v249
        %v251 = vmul.f32 %v241, %v246
        %v252 = vmul.f32 %v241, %v250
        %v253 = vadd.f32 %v237, %v251
        %v254 = vadd.f32 %v238, %v252
        %255 = vset.pattern.permute.xlu0 4
        %256 = vperm.xlu0 %255, %v189
        %v257 = vpop.permute.xlu0 %256
        %v259 = vlaneseq
        %v260 = vshrl.u32 %v259, 7
        %v261 = vsub.s32 4, %v260
        %v262 = vrot.slane %v190, %v261
        %v263 = vlaneseq
        %v264 = vshrl.u32 %v263, 7
        %v265 = vsub.s32 4, %v264
        %v266 = vrot.slane %v191, %v265
        %v267 = vmul.f32 %v257, %v262
        %v268 = vmul.f32 %v257, %v266
        %v269 = vadd.f32 %v253, %v267
        %v270 = vadd.f32 %v254, %v268
        %271 = vset.pattern.permute.xlu0 5
        %272 = vperm.xlu0 %271, %v189
        %v273 = vpop.permute.xlu0 %272
        %v275 = vlaneseq
        %v276 = vshrl.u32 %v275, 7
        %v277 = vsub.s32 5, %v276
        %v278 = vrot.slane %v190, %v277
        %v279 = vlaneseq
        %v280 = vshrl.u32 %v279, 7
        %v281 = vsub.s32 5, %v280
        %v282 = vrot.slane %v191, %v281
        %v283 = vmul.f32 %v273, %v278
        %v284 = vmul.f32 %v273, %v282
        %v285 = vadd.f32 %v269, %v283
        %v286 = vadd.f32 %v270, %v284
        %287 = vset.pattern.permute.xlu0 6
        %288 = vperm.xlu0 %287, %v189
        %v289 = vpop.permute.xlu0 %288
        %v291 = vlaneseq
        %v292 = vshrl.u32 %v291, 7
        %v293 = vsub.s32 6, %v292
        %v294 = vrot.slane %v190, %v293
        %v295 = vlaneseq
        %v296 = vshrl.u32 %v295, 7
        %v297 = vsub.s32 6, %v296
        %v298 = vrot.slane %v191, %v297
        %v299 = vmul.f32 %v289, %v294
        %v300 = vmul.f32 %v289, %v298
        %v301 = vadd.f32 %v285, %v299
        %v302 = vadd.f32 %v286, %v300
        %303 = vset.pattern.permute.xlu0 7
        %304 = vperm.xlu0 %303, %v189
        %v305 = vpop.permute.xlu0 %304
        %v307 = vlaneseq
        %v308 = vshrl.u32 %v307, 7
        %v309 = vsub.s32 7, %v308
        %v310 = vrot.slane %v190, %v309
        %v311 = vlaneseq
        %v312 = vshrl.u32 %v311, 7
        %v313 = vsub.s32 7, %v312
        %v314 = vrot.slane %v191, %v313
        %v315 = vmul.f32 %v305, %v310
        %v316 = vmul.f32 %v305, %v314
        %v317 = vadd.f32 %v301, %v315
        %v318 = vadd.f32 %v302, %v316
        %v319 = vld [vmem:[%s1] sm:$0xff]
        %321 = vset.pattern.permute.xlu0 0
        %322 = vperm.xlu0 %321, %v319
        %v323 = vpop.permute.xlu0 %322
        %v325 = vsub.f32 %v317, %v323
        %v326 = vsub.f32 %v318, %v323
        %327 = vst [vmem:[%s186] sm:$0xff] %v325
        %328 = vst [vmem:[%s186 + $0x8] sm:$0xff] %v326
        %s329 = sand.u32 %s96, 1
        %s330 = scalar_lea.sflag [#allocation4], %s329
        %s331 = sand.u32 %s96, 1
        %s332 = smul.addr %s331, 16
        %s333 = scalar_lea.vmem [#allocation5], %s332
        // Predicated region
        $region37: #{tpu_custom_call.1} parent=31 // pred_check
          %p334 = pneg %p106
        $region38: #{tpu_custom_call.1} parent=31 // pred_check_branch
          %336 = sbr.rel (%p334) target = $region40
        $region39: #{tpu_custom_call.1} parent=31 // pred_region
          %s337 = smul.u32 2, %s20
          %s339 = ssub.s32 256, 256
          %340 = vsyncadd %s330, %s339
          %s341 = smul.addr %s337, 128
          %s342 = scalar_lea.hbm %s3, %s341
          %s344 = sshll.u32 %s333, 4
          %s345 = int_to_ptr.vmem [resolvable:$true] %s344
          %347 = dma.vmem_to_hbm [thread:$0]  %s345, 256, %s342, %s330
        $region40: #{tpu_custom_call.1} parent=31 // pred_fallthru
          _
      $region32: #{tpu_custom_call.1} parent=5 // pred_fallthru
        _
      %p348 = scmp.le.s32.totalorder 2, %s15
      // Predicated region
      $region41: #{tpu_custom_call.1} parent=5 // pred_check
        %p349 = pneg %p348
      $region42: #{tpu_custom_call.1} parent=5 // pred_check_branch
        %351 = sbr.rel (%p349) target = $region44
      $region43: #{tpu_custom_call.1} parent=5 // pred_region
        %s352 = ssub.s32 %s15, 2
        // Predicated region
        $region45: #{tpu_custom_call.1} parent=43 // pred_check
          %p353 = pneg %p112
        $region46: #{tpu_custom_call.1} parent=43 // pred_check_branch
          %355 = sbr.rel (%p353) target = $region48
        $region47: #{tpu_custom_call.1} parent=43 // pred_region
          %s356 = sand.u32 %s97, 1
          %s357 = scalar_lea.sflag [#allocation4], %s356
          %s358 = sand.u32 %s97, 1
          %s359 = smul.addr %s358, 16
          %s360 = scalar_lea.vmem [#allocation5], %s359
          %361 = dma.done %s357, 256
        $region48: #{tpu_custom_call.1} parent=43 // pred_fallthru
          _
      $region44: #{tpu_custom_call.1} parent=5 // pred_fallthru
        _
    $region6: #{tpu_custom_call.1} parent=1 // loop_footer
      %s19 = sadd.s32 1, %s15
    $region7: #{tpu_custom_call.1} parent=1 // loop_footer_branch
      %14 = sbr.rel target = $region3
    $region8: #{tpu_custom_call.1} parent=1 // loop_exit
      _
    %362 = vsyncpa [#allocation3], 1
    %s363 = scalar_lea.sflag [#allocation3], 1
    %364 = vsyncpa %s363, 1
    %365 = vsyncpa [#allocation4], 1
    %s366 = scalar_lea.sflag [#allocation4], 1
    %367 = vsyncpa %s366, 1

</llo_original>
